<compile_context>
chip_gen: v6e
topology: v6e:2x2x1
jax: 0.10.0
libtpu: 0.0.40
codegen_flags: <defaults>
</compile_context>

<pallas_src>
import math
import numpy as np
import jax
import jax.numpy as jnp
from jax.experimental import pallas as pl
from jax.experimental.pallas import tpu as pltpu


def _rup(n, m):
    return (n + m - 1) // m * m


def _build_constants(c, hw, conv_weight):
    """Host-side (tiny, numpy) DFT / conv constants.

    Wr, Wi   : (cf, c) real/imag rows of the channel rfft.
    IWr, IWi : (c, cf) irfft applied to real/imag parts (1/C + Hermitian doubling).
    Gr, Gi   : (cf, c) gate matrices; gate_pre = [Gr; Gi] @ sum_hw(x)
               (Conv1d Toeplitz matrix and the 1/HW of the avg pool folded in).
    """
    cf = c // 2 + 1
    k = int(conv_weight.shape[0])
    p = k // 2

    n_idx = np.arange(c)
    k_idx = np.arange(cf)
    ang = 2.0 * np.pi * np.outer(k_idx, n_idx) / c
    Wr = np.cos(ang).astype(np.float32)                 # (cf, c)
    Wi = (-np.sin(ang)).astype(np.float32)              # (cf, c)
    wk = np.ones(cf, np.float32)
    if cf > 2:
        wk[1:cf - 1] = 2.0                              # Hermitian doubling
    ang2 = 2.0 * np.pi * np.outer(n_idx, k_idx) / c
    IWr = (np.cos(ang2) * wk / c).astype(np.float32)    # (c, cf)
    IWi = (-np.sin(ang2) * wk / c).astype(np.float32)   # (c, cf)

    wv = np.asarray(conv_weight, np.float32)
    M = np.zeros((c + 2, c + 2), np.float32)            # Conv1d (cross-corr) as Toeplitz
    for j in range(c + 2):
        for t in range(k):
            idx = j + t - p
            if 0 <= idx < c + 2:
                M[j, idx] = wv[t]
    # gate_pre = M @ [Wr@mean(x); Wi@mean(x)] = (M1@Wr + M2@Wi) @ mean(x)
    G = (M[:, :cf] @ Wr + M[:, cf:] @ Wi) / float(hw)   # (c+2, c), 1/HW folded in
    return dict(Wr=Wr, Wi=Wi, IWr=IWr, IWi=IWi,
                Gr=np.ascontiguousarray(G[:cf]), Gi=np.ascontiguousarray(G[cf:]))


def _pack_constants(cst, c, cf):
    """Pack all constants into one array: 8-aligned row offsets, 128-multiple width."""
    r_gr = 0
    r_gi = r_gr + _rup(cf, 8)
    r_wr = r_gi + _rup(cf, 8)
    r_wi = r_wr + _rup(cf, 8)
    r_iwr = r_wi + _rup(cf, 8)
    r_iwi = r_iwr + _rup(c, 8)
    rows = r_iwi + _rup(c, 8)
    width = max(128, _rup(c, 128))      # lane-dense so in-kernel slices stay tile-aligned
    K = np.zeros((rows, width), np.float32)
    K[r_gr:r_gr + cf, :c] = cst["Gr"]
    K[r_gi:r_gi + cf, :c] = cst["Gi"]
    K[r_wr:r_wr + cf, :c] = cst["Wr"]
    K[r_wi:r_wi + cf, :c] = cst["Wi"]
    K[r_iwr:r_iwr + c, :cf] = cst["IWr"]
    K[r_iwi:r_iwi + c, :cf] = cst["IWi"]
    return K, (r_gr, r_gi, r_wr, r_wi, r_iwr, r_iwi)


def _tau_fused(xf, K, offs, c, cf, hw, b, bt, use_bf16):
    """Single fused pass: grid over batch blocks; everything (pool, gate, folded
    transform, HW-wide matmul) per sample inside the kernel."""
    r_gr, r_gi, r_wr, r_wi, r_iwr, r_iwi = offs
    rows, width = K.shape

    def kernel(x_ref, k_ref, o_ref):
        # Constants: same block every grid step -> DMA'd once, no re-copy.
        gr_m = k_ref[r_gr:r_gr + cf, 0:c]
        gi_m = k_ref[r_gi:r_gi + cf, 0:c]
        wr = k_ref[r_wr:r_wr + cf, 0:c]
        wi = k_ref[r_wi:r_wi + cf, 0:c]
        iwr = k_ref[r_iwr:r_iwr + c, 0:cf]
        iwi = k_ref[r_iwi:r_iwi + c, 0:cf]

        @pl.loop(0, bt)
        def _(bb):
            xb = x_ref[bb]                                      # (c, hw) f32
            xs = jnp.sum(xb, axis=-1, keepdims=True)            # (c, 1) pooled sum
            gr = jax.nn.sigmoid(
                jnp.dot(gr_m, xs, preferred_element_type=jnp.float32))   # (cf, 1)
            gi = jax.nn.sigmoid(
                jnp.dot(gi_m, xs, preferred_element_type=jnp.float32))   # (cf, 1)
            # A = IWr @ diag(gr) @ Wr + IWi @ diag(gi) @ Wi  (rfft->gate->irfft folded)
            a = (jnp.dot(iwr, gr * wr, preferred_element_type=jnp.float32)
                 + jnp.dot(iwi, gi * wi, preferred_element_type=jnp.float32))  # (c, c)
            if use_bf16:
                y = jnp.dot(a.astype(jnp.bfloat16), xb.astype(jnp.bfloat16),
                            preferred_element_type=jnp.float32)
            else:
                y = jnp.dot(a, xb, preferred_element_type=jnp.float32)
            o_ref[bb] = y.astype(o_ref.dtype)

    in_blk = bt * _rup(c, 8) * _rup(hw, 128) * 4
    k_bytes = rows * width * 4
    vmem = int(min(max(4 * in_blk + 2 * k_bytes + (8 << 20), 16 << 20), 60 << 20))

    return pl.pallas_call(
        kernel,
        out_shape=jax.ShapeDtypeStruct((b, c, hw), jnp.float32),
        grid_spec=pltpu.PrefetchScalarGridSpec(
            num_scalar_prefetch=0,
            grid=(b // bt,),
            in_specs=[
                pl.BlockSpec((bt, c, hw), lambda i: (i, 0, 0)),
                pl.BlockSpec((rows, width), lambda i: (0, 0)),
            ],
            out_specs=pl.BlockSpec((bt, c, hw), lambda i: (i, 0, 0)),
        ),
        compiler_params=pltpu.CompilerParams(
            dimension_semantics=("parallel",),
            vmem_limit_bytes=vmem),
    )(xf, jnp.asarray(K))


def _tau_two_pass(xf, cst, c, cf, hw, b, block_hw, use_bf16):
    """Two-pass form for large C*HW: gates and folded A_b matrices from a cheap XLA
    reduction (tiny), then a pallas grid over (batch, hw tiles) doing only A_b @ x_tile."""
    xs = jnp.sum(xf, axis=-1)                                        # (b, c)
    Gr = jnp.asarray(cst["Gr"]); Gi = jnp.asarray(cst["Gi"])         # (cf, c)
    Wr = jnp.asarray(cst["Wr"]); Wi = jnp.asarray(cst["Wi"])         # (cf, c)
    IWr = jnp.asarray(cst["IWr"]); IWi = jnp.asarray(cst["IWi"])     # (c, cf)
    gr = jax.nn.sigmoid(xs @ Gr.T)                                   # (b, cf)
    gi = jax.nn.sigmoid(xs @ Gi.T)                                   # (b, cf)
    A = (jnp.einsum('nk,bk,kc->bnc', IWr, gr, Wr)
         + jnp.einsum('nk,bk,kc->bnc', IWi, gi, Wi)).astype(jnp.float32)  # (b, c, c)

    if block_hw is None:
        block_hw = max(128, min(2048, ((2 << 20) // (4 * c)) // 128 * 128))
    thw = hw if hw <= block_hw else block_hw                         # full dim or 128-mult

    def kernel(a_ref, x_ref, o_ref):
        a = a_ref[0]                                                 # (c, c)
        xb = x_ref[0]                                                # (c, thw)
        if use_bf16:
            y = jnp.dot(a.astype(jnp.bfloat16), xb.astype(jnp.bfloat16),
                        preferred_element_type=jnp.float32)
        else:
            y = jnp.dot(a, xb, preferred_element_type=jnp.float32)
        o_ref[0] = y.astype(o_ref.dtype)

    a_bytes = _rup(c, 8) * _rup(c, 128) * 4
    t_bytes = _rup(c, 8) * _rup(thw, 128) * 4
    vmem = int(min(max(2 * a_bytes + 4 * t_bytes + (8 << 20), 16 << 20), 60 << 20))

    return pl.pallas_call(
        kernel,
        out_shape=jax.ShapeDtypeStruct((b, c, hw), jnp.float32),
        grid_spec=pltpu.PrefetchScalarGridSpec(
            num_scalar_prefetch=0,
            grid=(b, pl.cdiv(hw, thw)),
            in_specs=[
                pl.BlockSpec((1, c, c), lambda bi, ti: (bi, 0, 0)),
                pl.BlockSpec((1, c, thw), lambda bi, ti: (bi, 0, ti)),
            ],
            out_specs=pl.BlockSpec((1, c, thw), lambda bi, ti: (bi, 0, ti)),
        ),
        compiler_params=pltpu.CompilerParams(
            dimension_semantics=("parallel", "parallel"),
            vmem_limit_bytes=vmem),
    )(A, xf)


def tau_transform_block(x, conv_weight, *, block_b=None, block_hw=None,
                        mode="auto", use_bf16=False):
    """x: (b, c, h, w) float32, conv_weight: (k,) float32. Returns (b, c, h, w)."""
    b, c, h, w = x.shape
    # torch.chunk(.., 2) + rfft/irfft round-trip in the module only make sense for even C.
    assert c % 2 == 0, "TAU_transform_block requires an even channel count"
    hw = h * w
    cf = c // 2 + 1

    cst = _build_constants(c, hw, np.asarray(conv_weight, np.float32))
    xf = jnp.asarray(x, jnp.float32).reshape(b, c, hw)   # contiguous reshape (no copy)

    if mode == "auto":
        # Fused pass (2 units of HBM traffic) while the per-sample slab and constants
        # stay small; otherwise hw-tiled two-pass (3 units, but bounded VMEM + pipelining).
        mode = "fused" if (c * hw * 4 <= (4 << 20) and c <= 256) else "two_pass"

    if mode == "fused":
        bytes_per_sample = c * hw * 4
        if block_b is None:
            # ~2 MiB input block per grid step, and >= 2 grid steps when possible so the
            # pipeline (and v7x's 2 TensorCores) have something to overlap/shard.
            block_b = max(1, (2 << 20) // max(1, bytes_per_sample))
            if b > 1:
                block_b = min(block_b, max(1, b // 2))
        block_b = max(1, min(int(block_b), b))
        while b % block_b:
            block_b -= 1
        out = _tau_fused(xf, *_pack_constants(cst, c, cf), c, cf, hw, b, block_b, use_bf16)
    elif mode == "two_pass":
        out = _tau_two_pass(xf, cst, c, cf, hw, b, block_hw, use_bf16)
    else:
        raise ValueError(f"unknown mode {mode!r}")

    return out.reshape(b, c, h, w)


def tau_reference(x, conv_weight):
    """Pure-JAX reference mirroring the PyTorch forward."""
    b, c, h, w = x.shape
    cf = c // 2 + 1
    k = int(conv_weight.shape[0])
    p = k // 2
    y = jnp.fft.rfft(x.astype(jnp.float32), axis=1)             # norm='backward'
    z = jnp.concatenate([y.real, y.imag], axis=1)               # (b, c+2, h, w)
    avg = jnp.mean(z, axis=(2, 3))                              # (b, c+2)
    avg_p = jnp.pad(avg, ((0, 0), (p, p)))
    conv = jnp.stack(
        [jnp.sum(avg_p[:, j:j + k] * conv_weight, axis=1) for j in range(c + 2)],
        axis=1)
    gate = jax.nn.sigmoid(conv)[:, :, None, None]
    zs = z * gate
    yc = zs[:, :cf] + 1j * zs[:, cf:]
    return jnp.fft.irfft(yc, n=c, axis=1)


def _conv_kernel_size(c, gamma=2, b=1):
    ks = int(abs((math.log(c, 2) + b) / gamma))
    return ks if ks % 2 else ks + 1


if __name__ == "__main__":
    key = jax.random.PRNGKey(0)

    def _check(B, C, H, W, key, **kw):
        ks = _conv_kernel_size(C)
        k_x, k_w = jax.random.split(key)
        conv_weight = jax.random.normal(k_w, (ks,), jnp.float32) * 0.5
        x = jax.random.normal(k_x, (B, C, H, W), jnp.float32)
        ref = jax.block_until_ready(tau_reference(x, conv_weight))
        out = jax.block_until_ready(tau_transform_block(x, conv_weight, **kw))
        np.testing.assert_allclose(np.asarray(out), np.asarray(ref),
                                   atol=1e-4, rtol=1e-4)

    k0, k1, k2 = jax.random.split(key, 3)

    # Main shape from the module spec (exercises fused path, grid=(2,), bt=1).
    _check(2, 8, 16, 16, k0)                               # auto -> fused
    _check(2, 8, 16, 16, k0, mode="fused", block_b=2)      # fused, in-kernel bt=2 loop
    _check(2, 8, 16, 16, k0, mode="two_pass")              # hw-tiled two-pass path

    # Non-128-multiple spatial extent (masked tail stores, no XLA pad/slice).
    _check(3, 16, 10, 10, k1, mode="fused")
    _check(3, 16, 10, 10, k1, mode="two_pass")

    print("KERNEL_OK")
</pallas_src>

<mosaic_0001>
module attributes {stable_mosaic.version = 11 : i64} {
  func.func @kernel(%arg0: i32, %arg1: memref<1x8x256xf32, #tpu.memory_space<vmem>>, %arg2: memref<48x128xf32, #tpu.memory_space<vmem>>, %arg3: memref<1x8x256xf32, #tpu.memory_space<vmem>>) attributes {dimension_semantics = [#tpu.dimension_semantics<parallel>], iteration_bounds = array<i64: 2>, scalar_prefetch = 0 : i64, scratch_operands = 0 : i64, tpu.core_type = #tpu.core_type<tc>, window_params = [{transform_indices = @transform_0, window_bounds = array<i64: 1, 8, 256>}, {pipeline_mode = #tpu.pipeline_mode<synchronous>, transform_indices = @transform_1, window_bounds = array<i64: 48, 128>}, {transform_indices = @transform_2, window_bounds = array<i64: 1, 8, 256>}]} {
    %c0 = arith.constant 0 : index
    %c0_0 = arith.constant 0 : index
    %0 = vector.load %arg2[%c0, %c0_0] : memref<48x128xf32, #tpu.memory_space<vmem>>, vector<5x8xf32>
    %c8 = arith.constant 8 : index
    %c0_1 = arith.constant 0 : index
    %1 = vector.load %arg2[%c8, %c0_1] : memref<48x128xf32, #tpu.memory_space<vmem>>, vector<5x8xf32>
    %c16 = arith.constant 16 : index
    %c0_2 = arith.constant 0 : index
    %2 = vector.load %arg2[%c16, %c0_2] : memref<48x128xf32, #tpu.memory_space<vmem>>, vector<5x8xf32>
    %c24 = arith.constant 24 : index
    %c0_3 = arith.constant 0 : index
    %3 = vector.load %arg2[%c24, %c0_3] : memref<48x128xf32, #tpu.memory_space<vmem>>, vector<5x8xf32>
    %c32 = arith.constant 32 : index
    %c0_4 = arith.constant 0 : index
    %4 = vector.load %arg2[%c32, %c0_4] : memref<48x128xf32, #tpu.memory_space<vmem>>, vector<8x5xf32>
    %c40 = arith.constant 40 : index
    %c0_5 = arith.constant 0 : index
    %5 = vector.load %arg2[%c40, %c0_5] : memref<48x128xf32, #tpu.memory_space<vmem>>, vector<8x5xf32>
    %c0_i32 = arith.constant 0 : i32
    %c1_i32 = arith.constant 1 : i32
    %6 = arith.muli %c0_i32, %c1_i32 : i32
    %c0_i32_6 = arith.constant 0 : i32
    %7 = arith.addi %c0_i32_6, %6 : i32
    %8 = arith.index_cast %7 : i32 to index
    %c0_7 = arith.constant 0 : index
    %c0_8 = arith.constant 0 : index
    %9 = vector.load %arg1[%8, %c0_7, %c0_8] : memref<1x8x256xf32, #tpu.memory_space<vmem>>, vector<1x8x256xf32>
    %10 = vector.shape_cast %9 : vector<1x8x256xf32> to vector<8x256xf32>
    %cst = arith.constant dense<0.000000e+00> : vector<8xf32>
    %11 = vector.multi_reduction <add>, %10, %cst [1] : vector<8x256xf32> to vector<8xf32>
    %12 = vector.shape_cast %11 : vector<8xf32> to vector<8x1xf32>
    %cst_9 = arith.constant dense<0.000000e+00> : vector<5x1xf32>
    %13 = tpu.matmul %0, %12, %cst_9 {dimension_numbers = #tpu.dot_dimension_numbers<[1], [0], [0], [1], [0, 0, 1, 1], [], []>} : vector<5x8xf32>, vector<8x1xf32>, vector<5x1xf32> -> vector<5x1xf32>
    %14 = arith.negf %13 : vector<5x1xf32>
    %15 = math.exp %14 : vector<5x1xf32>
    %cst_10 = arith.constant 1.000000e+00 : f32
    %16 = vector.broadcast %cst_10 : f32 to vector<5x1xf32>
    %17 = arith.addf %16, %15 : vector<5x1xf32>
    %18 = arith.divf %16, %17 : vector<5x1xf32>
    %cst_11 = arith.constant dense<0.000000e+00> : vector<5x1xf32>
    %19 = tpu.matmul %1, %12, %cst_11 {dimension_numbers = #tpu.dot_dimension_numbers<[1], [0], [0], [1], [0, 0, 1, 1], [], []>} : vector<5x8xf32>, vector<8x1xf32>, vector<5x1xf32> -> vector<5x1xf32>
    %20 = arith.negf %19 : vector<5x1xf32>
    %21 = math.exp %20 : vector<5x1xf32>
    %cst_12 = arith.constant 1.000000e+00 : f32
    %22 = vector.broadcast %cst_12 : f32 to vector<5x1xf32>
    %23 = arith.addf %22, %21 : vector<5x1xf32>
    %24 = arith.divf %22, %23 : vector<5x1xf32>
    %25 = vector.broadcast %18 : vector<5x1xf32> to vector<5x8xf32>
    %26 = arith.mulf %25, %2 : vector<5x8xf32>
    %cst_13 = arith.constant dense<0.000000e+00> : vector<8x8xf32>
    %27 = tpu.matmul %4, %26, %cst_13 {dimension_numbers = #tpu.dot_dimension_numbers<[1], [0], [0], [1], [0, 0, 1, 1], [], []>} : vector<8x5xf32>, vector<5x8xf32>, vector<8x8xf32> -> vector<8x8xf32>
    %28 = vector.broadcast %24 : vector<5x1xf32> to vector<5x8xf32>
    %29 = arith.mulf %28, %3 : vector<5x8xf32>
    %cst_14 = arith.constant dense<0.000000e+00> : vector<8x8xf32>
    %30 = tpu.matmul %5, %29, %cst_14 {dimension_numbers = #tpu.dot_dimension_numbers<[1], [0], [0], [1], [0, 0, 1, 1], [], []>} : vector<8x5xf32>, vector<5x8xf32>, vector<8x8xf32> -> vector<8x8xf32>
    %31 = arith.addf %27, %30 : vector<8x8xf32>
    %cst_15 = arith.constant dense<0.000000e+00> : vector<8x256xf32>
    %32 = tpu.matmul %31, %10, %cst_15 {dimension_numbers = #tpu.dot_dimension_numbers<[1], [0], [0], [1], [0, 0, 1, 1], [], []>} : vector<8x8xf32>, vector<8x256xf32>, vector<8x256xf32> -> vector<8x256xf32>
    %33 = arith.index_cast %7 : i32 to index
    %c0_16 = arith.constant 0 : index
    %c0_17 = arith.constant 0 : index
    %34 = vector.load %arg3[%33, %c0_16, %c0_17] : memref<1x8x256xf32, #tpu.memory_space<vmem>>, vector<1x8x256xf32>
    %35 = vector.shape_cast %34 : vector<1x8x256xf32> to vector<8x256xf32>
    %36 = vector.shape_cast %32 : vector<8x256xf32> to vector<1x8x256xf32>
    tpu.vector_store %arg3[%33, %c0_16, %c0_17], %36 {strides = array<i32>} : memref<1x8x256xf32, #tpu.memory_space<vmem>>, vector<1x8x256xf32>,
    %c1_i32_18 = arith.constant 1 : i32
    return
  }
  func.func @transform_0(%arg0: i32) -> (i32, i32, i32) {
    %c0_i32 = arith.constant 0 : i32
    %c0_i32_0 = arith.constant 0 : i32
    %c0_i32_1 = arith.constant 0 : i32
    return %arg0, %c0_i32, %c0_i32_0 : i32, i32, i32
  }
  func.func @transform_1(%arg0: i32) -> (i32, i32) {
    %c0_i32 = arith.constant 0 : i32
    %c0_i32_0 = arith.constant 0 : i32
    %c0_i32_1 = arith.constant 0 : i32
    return %c0_i32, %c0_i32_0 : i32, i32
  }
  func.func @transform_2(%arg0: i32) -> (i32, i32, i32) {
    %c0_i32 = arith.constant 0 : i32
    %c0_i32_0 = arith.constant 0 : i32
    %c0_i32_1 = arith.constant 0 : i32
    return %arg0, %c0_i32, %c0_i32_0 : i32, i32, i32
  }
}

</mosaic_0001>

<llo_original>
// kernel: tpu_custom_call.1
$region0: #{tpu_custom_call.1}
  #allocation0 [shape = 'u32[]', space=smem, size = 0x4, offset = 0x4, fixed_abs, tag = 'smem constant byte address 0x4 - core index']
  #allocation1 [shape = 'u32[144,128]{1,0:T(1,128)}', space=vmem, size = 0x12000, scoped, tag = 'internal scratch']
  %s0 = inlined_call_operand.hbm [shape: f32[2,8,256], index: 0, kind: input, shape index: {}]
  %s1 = inlined_call_operand.hbm [shape: f32[48,128], index: 1, kind: input, shape index: {}]
  %s2 = inlined_call_operand.hbm [shape: f32[2,8,256], index: 2, kind: output, shape index: {}]
  %s3 = sld [smem:[#allocation0]]
  $region49: #{tpu_custom_call.1} parent=0
    _
  %s5 = ssub.s32 1, %s3
  %s6 = scalar_select 0, %s5, %s3
  $region1: #{tpu_custom_call.1} parent=0
    #allocation2 [shape = 'u8[16384]{0}', space=vmem, size = 0x4000, scoped, tag = 'input window, operand 0']
    #allocation3 [shape = 's32[2]{0}', space=sflag, size = 0x8, scoped, tag = 'scoped memory for tpu_custom_call.1']
    #allocation4 [shape = 's32[2]{0}', space=sflag, size = 0x8, scoped, tag = 'scoped memory for tpu_custom_call.1']
    #allocation5 [shape = 'u8[24576]{0}', space=vmem, size = 0x6000, scoped, tag = 'input window, operand 1, single buffered']
    #allocation6 [shape = 's32[1]{0}', space=sflag, size = 0x4, scoped, tag = 'scoped memory for tpu_custom_call.1']
    #allocation7 [shape = 'u8[16384]{0}', space=vmem, size = 0x4000, scoped, tag = 'output window, operand 0']
    %7 = vsyncpa [#allocation3], 0
    %s8 = scalar_lea.sflag [#allocation3], 1
    %9 = vsyncpa %s8, 0
    %10 = vsyncpa [#allocation6], 0
    %11 = vsyncpa [#allocation4], 0
    %s12 = scalar_lea.sflag [#allocation4], 1
    %13 = vsyncpa %s12, 0
    loop: start=0, step=1, limit=4
    $region2: #{tpu_custom_call.1} parent=1 // loop_pre_header
      _
    $region3: #{tpu_custom_call.1} parent=1 // loop_header
      %s15 = sphi 0, %s19
      %p16 = scmp.ge.s32.totalorder %s15, 4
      %s25 = sphi 0, %s27
      %s28 = sphi 0, %s25
      %s29 = sphi 0, %s28
      %s45 = sphi 0, %s29
      %s49 = sphi 0, %s49
      %s51 = sphi 0, %s49
      %s52 = sphi 0, %s51
      %s66 = sphi 0, %s52
      %s72 = sphi 0, %s74
      %s75 = sphi 0, %s72
      %s76 = sphi 0, %s75
      %s92 = sphi 0, %s76
    $region4: #{tpu_custom_call.1} parent=1 // loop_header_branch
      %18 = sbr.rel (%p16) target = $region8
    $region5: #{tpu_custom_call.1} parent=1 // loop_body
      %s20 = ssub.s32 %s15, 1
      %s21 = ssub.s32 %s15, 2
      %s22 = sadd.s32 %s15, 1
      %s23 = ssub.s32 %s15, %s22
      %p24 = scmp.eq.s32.totalorder %s23, 0
      %s26 = sadd.s32 %s25, 1
      %s27 = scalar_select %p24, %s25, %s26
      %p30 = pneg %p24
      %p31 = scmp.eq.s32.totalorder %s15, 1
      %p32 = por %p30, %p31
      %p33 = scmp.ne.s32.totalorder %s25, %s28
      %p34 = scmp.eq.s32.totalorder %s15, 0
      %p35 = por %p33, %p34
      %p36 = scmp.ne.s32.totalorder %s25, %s28
      %p37 = scmp.eq.s32.totalorder %s20, 1
      %p38 = por %p36, %p37
      %p39 = scmp.ne.s32.totalorder %s28, %s29
      %p40 = scmp.eq.s32.totalorder %s20, 0
      %p41 = por %p39, %p40
      %p42 = scmp.ne.s32.totalorder %s28, %s29
      %p43 = scmp.eq.s32.totalorder %s21, 1
      %p44 = por %p42, %p43
      %p46 = scmp.ne.s32.totalorder %s29, %s45
      %p47 = scmp.eq.s32.totalorder %s21, 0
      %p48 = por %p46, %p47
      %s50 = sadd.s32 %s49, 1
      %p53 = scmp.eq.s32.totalorder %s15, 1
      %p54 = scmp.ne.s32.totalorder %s49, %s51
      %p55 = scmp.eq.s32.totalorder %s15, 0
      %p56 = por %p54, %p55
      %p57 = scmp.ne.s32.totalorder %s49, %s51
      %p58 = scmp.eq.s32.totalorder %s20, 1
      %p59 = por %p57, %p58
      %p60 = scmp.ne.s32.totalorder %s51, %s52
      %p61 = scmp.eq.s32.totalorder %s20, 0
      %p62 = por %p60, %p61
      %p63 = scmp.ne.s32.totalorder %s51, %s52
      %p64 = scmp.eq.s32.totalorder %s21, 1
      %p65 = por %p63, %p64
      %p67 = scmp.ne.s32.totalorder %s52, %s66
      %p68 = scmp.eq.s32.totalorder %s21, 0
      %p69 = por %p67, %p68
      %s70 = ssub.s32 %s15, %s22
      %p71 = scmp.eq.s32.totalorder %s70, 0
      %s73 = sadd.s32 %s72, 1
      %s74 = scalar_select %p71, %s72, %s73
      %p77 = pneg %p71
      %p78 = scmp.eq.s32.totalorder %s15, 1
      %p79 = por %p77, %p78
      %p80 = scmp.ne.s32.totalorder %s72, %s75
      %p81 = scmp.eq.s32.totalorder %s15, 0
      %p82 = por %p80, %p81
      %p83 = scmp.ne.s32.totalorder %s72, %s75
      %p84 = scmp.eq.s32.totalorder %s20, 1
      %p85 = por %p83, %p84
      %p86 = scmp.ne.s32.totalorder %s75, %s76
      %p87 = scmp.eq.s32.totalorder %s20, 0
      %p88 = por %p86, %p87
      %p89 = scmp.ne.s32.totalorder %s75, %s76
      %p90 = scmp.eq.s32.totalorder %s21, 1
      %p91 = por %p89, %p90
      %p93 = scmp.ne.s32.totalorder %s76, %s92
      %p94 = scmp.eq.s32.totalorder %s21, 0
      %p95 = por %p93, %p94
      %p96 = scmp.le.s32.totalorder 1, %s15
      %p97 = scmp.lt.s32.totalorder %s15, 3
      %p98 = pnand %p96, %p97
      %p99 = pneg %p98
      // Predicated region
      $region9: #{tpu_custom_call.1} parent=5 // pred_check
        _
      $region10: #{tpu_custom_call.1} parent=5 // pred_check_branch
        %101 = sbr.rel (%p98) target = $region12
      $region11: #{tpu_custom_call.1} parent=5 // pred_region
        %s102 = ssub.s32 %s15, 1
        // Predicated region
        $region13: #{tpu_custom_call.1} parent=11 // pred_check
          %p103 = pneg %p62
        $region14: #{tpu_custom_call.1} parent=11 // pred_check_branch
          %105 = sbr.rel (%p103) target = $region16
        $region15: #{tpu_custom_call.1} parent=11 // pred_region
          %s107 = ssub.s32 768, 768
          %108 = vsyncadd [#allocation6], %s107
          %s109 = sshll.u32 [#allocation5], 4
          %s110 = int_to_ptr.vmem [resolvable:$true] %s109
          %115 = dma.hbm_to_vmem [thread:$0]  %s1, 768, %s110, [#allocation6], 128, 128, 8
        $region16: #{tpu_custom_call.1} parent=11 // pred_fallthru
          _
      $region12: #{tpu_custom_call.1} parent=5 // pred_fallthru
        _
      %p116 = scmp.lt.s32.totalorder %s15, 2
      // Predicated region
      $region17: #{tpu_custom_call.1} parent=5 // pred_check
        %p117 = pneg %p116
      $region18: #{tpu_custom_call.1} parent=5 // pred_check_branch
        %119 = sbr.rel (%p117) target = $region20
      $region19: #{tpu_custom_call.1} parent=5 // pred_region
        // Predicated region
        $region21: #{tpu_custom_call.1} parent=19 // pred_check
          %p120 = pneg %p35
        $region22: #{tpu_custom_call.1} parent=19 // pred_check_branch
          %122 = sbr.rel (%p120) target = $region24
        $region23: #{tpu_custom_call.1} parent=19 // pred_region
          %s123 = sand.u32 %s25, 1
          %s124 = scalar_lea.sflag [#allocation3], %s123
          %s125 = sand.u32 %s25, 1
          %s126 = smul.addr %s125, 16
          %s127 = scalar_lea.vmem [#allocation2], %s126
          %s129 = ssub.s32 256, 256
          %130 = vsyncadd %s124, %s129
          %s131 = smul.addr %s15, 2
          %s132 = smul.addr %s131, 128
          %s133 = scalar_lea.hbm %s0, %s132
          %s135 = sshll.u32 %s127, 4
          %s136 = int_to_ptr.vmem [resolvable:$true] %s135
          %138 = dma.hbm_to_vmem [thread:$0]  %s133, 256, %s136, %s124
        $region24: #{tpu_custom_call.1} parent=19 // pred_fallthru
          _
      $region20: #{tpu_custom_call.1} parent=5 // pred_fallthru
        _
      %p139 = scmp.le.s32.totalorder 1, %s15
      %p140 = scmp.lt.s32.totalorder %s15, 3
      %p141 = pnand %p139, %p140
      %p142 = pneg %p141
      // Predicated region
      $region25: #{tpu_custom_call.1} parent=5 // pred_check
        _
      $region26: #{tpu_custom_call.1} parent=5 // pred_check_branch
        %144 = sbr.rel (%p141) target = $region28
      $region27: #{tpu_custom_call.1} parent=5 // pred_region
        %s145 = ssub.s32 %s15, 1
        %s146 = sand.u32 %s28, 1
        %s147 = scalar_lea.sflag [#allocation3], %s146
        %s148 = sand.u32 %s28, 1
        %s149 = smul.addr %s148, 16
        %s150 = scalar_lea.vmem [#allocation2], %s149
        // Predicated region
        $region29: #{tpu_custom_call.1} parent=27 // pred_check
          %p151 = pneg %p41
        $region30: #{tpu_custom_call.1} parent=27 // pred_check_branch
          %153 = sbr.rel (%p151) target = $region32
        $region31: #{tpu_custom_call.1} parent=27 // pred_region
          %154 = dma.done %s147, 256
        $region32: #{tpu_custom_call.1} parent=27 // pred_fallthru
          _
        // Predicated region
        $region33: #{tpu_custom_call.1} parent=27 // pred_check
          %p155 = pneg %p62
        $region34: #{tpu_custom_call.1} parent=27 // pred_check_branch
          %157 = sbr.rel (%p155) target = $region36
        $region35: #{tpu_custom_call.1} parent=27 // pred_region
          %158 = dma.done [#allocation6], 768
        $region36: #{tpu_custom_call.1} parent=27 // pred_fallthru
          _
        %s159 = sand.u32 %s28, 1
        %s160 = scalar_lea.sflag [#allocation3], %s159
        %s161 = sand.u32 %s28, 1
        %s162 = smul.addr %s161, 16
        %s163 = scalar_lea.vmem [#allocation2], %s162
        %p164 = pneg %p41
        %p165 = pneg %p38
        %p166 = pneg %p62
        %p167 = pneg %p59
        %p168 = pneg %p88
        %p169 = pneg %p85
        %s170 = sand.u32 %s75, 1
        %s171 = scalar_lea.sflag [#allocation4], %s170
        %s172 = sand.u32 %s75, 1
        %s173 = smul.addr %s172, 16
        %s174 = scalar_lea.vmem [#allocation7], %s173
        %v175 = vld [vmem:[#allocation5] sm:$0x1f]
        %v176 = vld [vmem:[#allocation5 + $0x8] sm:$0x1f]
        %v177 = vld [vmem:[#allocation5 + $0x10] sm:$0x1f]
        %v178 = vld [vmem:[#allocation5 + $0x18] sm:$0x1f]
        %v179 = vld [vmem:[#allocation5 + $0x20] sm:$0xff]
        %v180 = vld [vmem:[#allocation5 + $0x28] sm:$0xff]
        %v181 = vld [vmem:[%s150] sm:$0xff]
        %v182 = vld [vmem:[%s150 + $0x8] sm:$0xff]
        %v183 = vadd.f32 %v181, %v182
        %184 = vadd.xlane.f32.xlu0 %v183
        %v185 = vpop.xlane.xlu0 %184
        %vm186 = vcmask 64512
        %v188 = vsel %vm186, %v175, 0
        %190 = vmatprep.subr.mxu0 0.0
        %191 = vmatpush1.msra.mxu0 0.0
        %192 = vmatprep.subr.mxu0 0.0
        %193 = vmatpush1.msra.mxu0 0.0
        %194 = vmatprep.subr.mxu0 0.0
        %195 = vmatpush1.msra.mxu0 0.0
        %196 = vmatprep.subr.mxu0 0.0
        %197 = vmatpush1.msra.mxu0 0.0
        %198 = vmatprep.subr.mxu0 0.0
        %199 = vmatpush1.msra.mxu0 0.0
        %200 = vmatprep.subr.mxu0 0.0
        %201 = vmatpush1.msra.mxu0 0.0
        %202 = vmatprep.subr.mxu0 0.0
        %203 = vmatpush1.msra.mxu0 0.0
        %204 = vmatprep.subr.mxu0 0.0
        %205 = vmatpush1.msra.mxu0 0.0
        %206 = vmatprep.subr.mxu0 0.0
        %207 = vmatpush1.msra.mxu0 0.0
        %208 = vmatprep.subr.mxu0 0.0
        %209 = vmatpush1.msra.mxu0 0.0
        %210 = vmatprep.subr.mxu0 0.0
        %211 = vmatpush1.msra.mxu0 0.0
        %212 = vmatprep.subr.mxu0 0.0
        %213 = vmatpush1.msra.mxu0 0.0
        %214 = vmatprep.subr.mxu0 0.0
        %215 = vmatpush1.msra.mxu0 0.0
        %216 = vmatprep.subr.mxu0 0.0
        %217 = vmatpush1.msra.mxu0 0.0
        %218 = vmatprep.subr.mxu0 0.0
        %219 = vmatpush1.msra.mxu0 0.0
        %220 = vmatprep.subr.mxu0 0.0
        %221 = vmatpush1.msra.mxu0 %v185
        %222 = vmatprep.subr.mxu0 0.0
        %223 = vmatpush2.msra.mxu0 0.0
        %224 = vmatprep.subr.mxu0 0.0
        %225 = vmatpush2.msra.mxu0 0.0
        %226 = vmatprep.subr.mxu0 0.0
        %227 = vmatpush2.msra.mxu0 0.0
        %228 = vmatprep.subr.mxu0 0.0
        %229 = vmatpush2.msra.mxu0 0.0
        %230 = vmatprep.subr.mxu0 0.0
        %231 = vmatpush2.msra.mxu0 0.0
        %232 = vmatprep.subr.mxu0 0.0
        %233 = vmatpush2.msra.mxu0 0.0
        %234 = vmatprep.subr.mxu0 0.0
        %235 = vmatpush2.msra.mxu0 0.0
        %236 = vmatprep.subr.mxu0 0.0
        %237 = vmatpush2.msra.mxu0 0.0
        %238 = vmatprep.subr.mxu0 0.0
        %239 = vmatpush2.msra.mxu0 0.0
        %240 = vmatprep.subr.mxu0 0.0
        %241 = vmatpush2.msra.mxu0 0.0
        %242 = vmatprep.subr.mxu0 0.0
        %243 = vmatpush2.msra.mxu0 0.0
        %244 = vmatprep.subr.mxu0 0.0
        %245 = vmatpush2.msra.mxu0 0.0
        %246 = vmatprep.subr.mxu0 0.0
        %247 = vmatpush2.msra.mxu0 0.0
        %248 = vmatprep.subr.mxu0 0.0
        %249 = vmatpush2.msra.mxu0 0.0
        %250 = vmatprep.subr.mxu0 0.0
        %251 = vmatpush2.msra.mxu0 0.0
        %252 = vmatprep.subr.mxu0 0.0
        %253 = vmatpush2.msra.mxu0 0.0
        %254 = vmatprep.mubr.f32.mxu0 0.0
        %255 = vmatmul.mubr.f32.gmra.mxu0 %v188
        %v256 = vpop.f32.mrf.mxu0
        %v257 = vadd.f32 0.0, %v256
        %v258 = vpop.f32.mrf.mxu0
        %259 = vdwg.mxu0
        %v260 = vxor.u32 %v257, 2147483648
        %v261 = vmul.f32 %v260, 1.442695
        %v262 = vpow.pop %v261
        %v263 = vadd.f32 %v262, 1.0
        %v264 = vrcp.pop %v263
        %v265 = vmul.f32 1.0, %v264
        %v267 = vsel %vm186, %v176, 0
        %269 = vmatprep.subr.mxu0 0.0
        %270 = vmatpush1.msra.mxu0 0.0
        %271 = vmatprep.subr.mxu0 0.0
        %272 = vmatpush1.msra.mxu0 0.0
        %273 = vmatprep.subr.mxu0 0.0
        %274 = vmatpush1.msra.mxu0 0.0
        %275 = vmatprep.subr.mxu0 0.0
        %276 = vmatpush1.msra.mxu0 0.0
        %277 = vmatprep.subr.mxu0 0.0
        %278 = vmatpush1.msra.mxu0 0.0
        %279 = vmatprep.subr.mxu0 0.0
        %280 = vmatpush1.msra.mxu0 0.0
        %281 = vmatprep.subr.mxu0 0.0
        %282 = vmatpush1.msra.mxu0 0.0
        %283 = vmatprep.subr.mxu0 0.0
        %284 = vmatpush1.msra.mxu0 0.0
        %285 = vmatprep.subr.mxu0 0.0
        %286 = vmatpush1.msra.mxu0 0.0
        %287 = vmatprep.subr.mxu0 0.0
        %288 = vmatpush1.msra.mxu0 0.0
        %289 = vmatprep.subr.mxu0 0.0
        %290 = vmatpush1.msra.mxu0 0.0
        %291 = vmatprep.subr.mxu0 0.0
        %292 = vmatpush1.msra.mxu0 0.0
        %293 = vmatprep.subr.mxu0 0.0
        %294 = vmatpush1.msra.mxu0 0.0
        %295 = vmatprep.subr.mxu0 0.0
        %296 = vmatpush1.msra.mxu0 0.0
        %297 = vmatprep.subr.mxu0 0.0
        %298 = vmatpush1.msra.mxu0 0.0
        %299 = vmatprep.subr.mxu0 0.0
        %300 = vmatpush1.msra.mxu0 %v185
        %301 = vmatprep.subr.mxu0 0.0
        %302 = vmatpush2.msra.mxu0 0.0
        %303 = vmatprep.subr.mxu0 0.0
        %304 = vmatpush2.msra.mxu0 0.0
        %305 = vmatprep.subr.mxu0 0.0
        %306 = vmatpush2.msra.mxu0 0.0
        %307 = vmatprep.subr.mxu0 0.0
        %308 = vmatpush2.msra.mxu0 0.0
        %309 = vmatprep.subr.mxu0 0.0
        %310 = vmatpush2.msra.mxu0 0.0
        %311 = vmatprep.subr.mxu0 0.0
        %312 = vmatpush2.msra.mxu0 0.0
        %313 = vmatprep.subr.mxu0 0.0
        %314 = vmatpush2.msra.mxu0 0.0
        %315 = vmatprep.subr.mxu0 0.0
        %316 = vmatpush2.msra.mxu0 0.0
        %317 = vmatprep.subr.mxu0 0.0
        %318 = vmatpush2.msra.mxu0 0.0
        %319 = vmatprep.subr.mxu0 0.0
        %320 = vmatpush2.msra.mxu0 0.0
        %321 = vmatprep.subr.mxu0 0.0
        %322 = vmatpush2.msra.mxu0 0.0
        %323 = vmatprep.subr.mxu0 0.0
        %324 = vmatpush2.msra.mxu0 0.0
        %325 = vmatprep.subr.mxu0 0.0
        %326 = vmatpush2.msra.mxu0 0.0
        %327 = vmatprep.subr.mxu0 0.0
        %328 = vmatpush2.msra.mxu0 0.0
        %329 = vmatprep.subr.mxu0 0.0
        %330 = vmatpush2.msra.mxu0 0.0
        %331 = vmatprep.subr.mxu0 0.0
        %332 = vmatpush2.msra.mxu0 0.0
        %333 = vmatprep.mubr.f32.mxu0 0.0
        %334 = vmatmul.mubr.f32.gmra.mxu0 %v267
        %v335 = vpop.f32.mrf.mxu0
        %v336 = vadd.f32 0.0, %v335
        %v337 = vpop.f32.mrf.mxu0
        %338 = vdwg.mxu0
        %v339 = vxor.u32 %v336, 2147483648
        %v340 = vmul.f32 %v339, 1.442695
        %v341 = vpow.pop %v340
        %v342 = vadd.f32 %v341, 1.0
        %v343 = vrcp.pop %v342
        %v344 = vmul.f32 1.0, %v343
        %346 = vset.pattern.permute.xlu0 0
        %347 = vperm.xlu0 %346, %v265
        %v348 = vpop.permute.xlu0 %347
        %v350 = vmul.f32 %v348, %v177
        %352 = vset.pattern.permute.xlu0 0
        %353 = vperm.xlu0 %352, %v344
        %v354 = vpop.permute.xlu0 %353
        %v356 = vmul.f32 %v354, %v178
        %vm357 = vcmask 39936
        %v359 = vsel %vm357, %v180, 0
        %vm361 = vcmask 1044480
        %v363 = vsel %vm361, %v356, 0
        %365 = vmatprep.subr.mxu0 0.0
        %366 = vmatpush1.msra.mxu0 0.0
        %367 = vmatprep.subr.mxu0 0.0
        %368 = vmatpush1.msra.mxu0 0.0
        %369 = vmatprep.subr.mxu0 0.0
        %370 = vmatpush1.msra.mxu0 0.0
        %371 = vmatprep.subr.mxu0 0.0
        %372 = vmatpush1.msra.mxu0 0.0
        %373 = vmatprep.subr.mxu0 0.0
        %374 = vmatpush1.msra.mxu0 0.0
        %375 = vmatprep.subr.mxu0 0.0
        %376 = vmatpush1.msra.mxu0 0.0
        %377 = vmatprep.subr.mxu0 0.0
        %378 = vmatpush1.msra.mxu0 0.0
        %379 = vmatprep.subr.mxu0 0.0
        %380 = vmatpush1.msra.mxu0 0.0
        %381 = vmatprep.subr.mxu0 0.0
        %382 = vmatpush1.msra.mxu0 0.0
        %383 = vmatprep.subr.mxu0 0.0
        %384 = vmatpush1.msra.mxu0 0.0
        %385 = vmatprep.subr.mxu0 0.0
        %386 = vmatpush1.msra.mxu0 0.0
        %387 = vmatprep.subr.mxu0 0.0
        %388 = vmatpush1.msra.mxu0 0.0
        %389 = vmatprep.subr.mxu0 0.0
        %390 = vmatpush1.msra.mxu0 0.0
        %391 = vmatprep.subr.mxu0 0.0
        %392 = vmatpush1.msra.mxu0 0.0
        %393 = vmatprep.subr.mxu0 0.0
        %394 = vmatpush1.msra.mxu0 0.0
        %395 = vmatprep.subr.mxu0 0.0
        %396 = vmatpush1.msra.mxu0 %v363
        %397 = vmatprep.subr.mxu0 0.0
        %398 = vmatpush2.msra.mxu0 0.0
        %399 = vmatprep.subr.mxu0 0.0
        %400 = vmatpush2.msra.mxu0 0.0
        %401 = vmatprep.subr.mxu0 0.0
        %402 = vmatpush2.msra.mxu0 0.0
        %403 = vmatprep.subr.mxu0 0.0
        %404 = vmatpush2.msra.mxu0 0.0
        %405 = vmatprep.subr.mxu0 0.0
        %406 = vmatpush2.msra.mxu0 0.0
        %407 = vmatprep.subr.mxu0 0.0
        %408 = vmatpush2.msra.mxu0 0.0
        %409 = vmatprep.subr.mxu0 0.0
        %410 = vmatpush2.msra.mxu0 0.0
        %411 = vmatprep.subr.mxu0 0.0
        %412 = vmatpush2.msra.mxu0 0.0
        %413 = vmatprep.subr.mxu0 0.0
        %414 = vmatpush2.msra.mxu0 0.0
        %415 = vmatprep.subr.mxu0 0.0
        %416 = vmatpush2.msra.mxu0 0.0
        %417 = vmatprep.subr.mxu0 0.0
        %418 = vmatpush2.msra.mxu0 0.0
        %419 = vmatprep.subr.mxu0 0.0
        %420 = vmatpush2.msra.mxu0 0.0
        %421 = vmatprep.subr.mxu0 0.0
        %422 = vmatpush2.msra.mxu0 0.0
        %423 = vmatprep.subr.mxu0 0.0
        %424 = vmatpush2.msra.mxu0 0.0
        %425 = vmatprep.subr.mxu0 0.0
        %426 = vmatpush2.msra.mxu0 0.0
        %427 = vmatprep.subr.mxu0 0.0
        %428 = vmatpush2.msra.mxu0 0.0
        %429 = vmatprep.mubr.f32.mxu0 0.0
        %430 = vmatmul.mubr.f32.gmra.mxu0 %v359
        %v431 = vpop.f32.mrf.mxu0
        %v432 = vadd.f32 0.0, %v431
        %v433 = vpop.f32.mrf.mxu0
        %434 = vdwg.mxu0
        %v436 = vsel %vm357, %v179, 0
        %v439 = vsel %vm361, %v350, 0
        %441 = vmatprep.subr.mxu0 0.0
        %442 = vmatpush1.msra.mxu0 0.0
        %443 = vmatprep.subr.mxu0 0.0
        %444 = vmatpush1.msra.mxu0 0.0
        %445 = vmatprep.subr.mxu0 0.0
        %446 = vmatpush1.msra.mxu0 0.0
        %447 = vmatprep.subr.mxu0 0.0
        %448 = vmatpush1.msra.mxu0 0.0
        %449 = vmatprep.subr.mxu0 0.0
        %450 = vmatpush1.msra.mxu0 0.0
        %451 = vmatprep.subr.mxu0 0.0
        %452 = vmatpush1.msra.mxu0 0.0
        %453 = vmatprep.subr.mxu0 0.0
        %454 = vmatpush1.msra.mxu0 0.0
        %455 = vmatprep.subr.mxu0 0.0
        %456 = vmatpush1.msra.mxu0 0.0
        %457 = vmatprep.subr.mxu0 0.0
        %458 = vmatpush1.msra.mxu0 0.0
        %459 = vmatprep.subr.mxu0 0.0
        %460 = vmatpush1.msra.mxu0 0.0
        %461 = vmatprep.subr.mxu0 0.0
        %462 = vmatpush1.msra.mxu0 0.0
        %463 = vmatprep.subr.mxu0 0.0
        %464 = vmatpush1.msra.mxu0 0.0
        %465 = vmatprep.subr.mxu0 0.0
        %466 = vmatpush1.msra.mxu0 0.0
        %467 = vmatprep.subr.mxu0 0.0
        %468 = vmatpush1.msra.mxu0 0.0
        %469 = vmatprep.subr.mxu0 0.0
        %470 = vmatpush1.msra.mxu0 0.0
        %471 = vmatprep.subr.mxu0 0.0
        %472 = vmatpush1.msra.mxu0 %v439
        %473 = vmatprep.subr.mxu0 0.0
        %474 = vmatpush2.msra.mxu0 0.0
        %475 = vmatprep.subr.mxu0 0.0
        %476 = vmatpush2.msra.mxu0 0.0
        %477 = vmatprep.subr.mxu0 0.0
        %478 = vmatpush2.msra.mxu0 0.0
        %479 = vmatprep.subr.mxu0 0.0
        %480 = vmatpush2.msra.mxu0 0.0
        %481 = vmatprep.subr.mxu0 0.0
        %482 = vmatpush2.msra.mxu0 0.0
        %483 = vmatprep.subr.mxu0 0.0
        %484 = vmatpush2.msra.mxu0 0.0
        %485 = vmatprep.subr.mxu0 0.0
        %486 = vmatpush2.msra.mxu0 0.0
        %487 = vmatprep.subr.mxu0 0.0
        %488 = vmatpush2.msra.mxu0 0.0
        %489 = vmatprep.subr.mxu0 0.0
        %490 = vmatpush2.msra.mxu0 0.0
        %491 = vmatprep.subr.mxu0 0.0
        %492 = vmatpush2.msra.mxu0 0.0
        %493 = vmatprep.subr.mxu0 0.0
        %494 = vmatpush2.msra.mxu0 0.0
        %495 = vmatprep.subr.mxu0 0.0
        %496 = vmatpush2.msra.mxu0 0.0
        %497 = vmatprep.subr.mxu0 0.0
        %498 = vmatpush2.msra.mxu0 0.0
        %499 = vmatprep.subr.mxu0 0.0
        %500 = vmatpush2.msra.mxu0 0.0
        %501 = vmatprep.subr.mxu0 0.0
        %502 = vmatpush2.msra.mxu0 0.0
        %503 = vmatprep.subr.mxu0 0.0
        %504 = vmatpush2.msra.mxu0 0.0
        %505 = vmatprep.mubr.f32.mxu0 0.0
        %506 = vmatmul.mubr.f32.gmra.mxu0 %v436
        %v507 = vpop.f32.mrf.mxu0
        %v508 = vadd.f32 %v432, %v507
        %v509 = vpop.f32.mrf.mxu0
        %510 = vdwg.mxu0
        %v512 = vsel %vm186, %v508, 0
        %514 = vmatprep.subr.mxu0 0.0
        %515 = vmatpush1.msra.mxu0 0.0
        %516 = vmatprep.subr.mxu0 0.0
        %517 = vmatpush1.msra.mxu0 0.0
        %518 = vmatprep.subr.mxu0 0.0
        %519 = vmatpush1.msra.mxu0 0.0
        %520 = vmatprep.subr.mxu0 0.0
        %521 = vmatpush1.msra.mxu0 0.0
        %522 = vmatprep.subr.mxu0 0.0
        %523 = vmatpush1.msra.mxu0 0.0
        %524 = vmatprep.subr.mxu0 0.0
        %525 = vmatpush1.msra.mxu0 0.0
        %526 = vmatprep.subr.mxu0 0.0
        %527 = vmatpush1.msra.mxu0 0.0
        %528 = vmatprep.subr.mxu0 0.0
        %529 = vmatpush1.msra.mxu0 0.0
        %530 = vmatprep.subr.mxu0 0.0
        %531 = vmatpush1.msra.mxu0 0.0
        %532 = vmatprep.subr.mxu0 0.0
        %533 = vmatpush1.msra.mxu0 0.0
        %534 = vmatprep.subr.mxu0 0.0
        %535 = vmatpush1.msra.mxu0 0.0
        %536 = vmatprep.subr.mxu0 0.0
        %537 = vmatpush1.msra.mxu0 0.0
        %538 = vmatprep.subr.mxu0 0.0
        %539 = vmatpush1.msra.mxu0 0.0
        %540 = vmatprep.subr.mxu0 0.0
        %541 = vmatpush1.msra.mxu0 0.0
        %542 = vmatprep.subr.mxu0 0.0
        %543 = vmatpush1.msra.mxu0 0.0
        %544 = vmatprep.subr.mxu0 %v182
        %545 = vmatpush1.msra.mxu0 %v181
        %546 = vmatprep.subr.mxu0 0.0
        %547 = vmatpush2.msra.mxu0 0.0
        %548 = vmatprep.subr.mxu0 0.0
        %549 = vmatpush2.msra.mxu0 0.0
        %550 = vmatprep.subr.mxu0 0.0
        %551 = vmatpush2.msra.mxu0 0.0
        %552 = vmatprep.subr.mxu0 0.0
        %553 = vmatpush2.msra.mxu0 0.0
        %554 = vmatprep.subr.mxu0 0.0
        %555 = vmatpush2.msra.mxu0 0.0
        %556 = vmatprep.subr.mxu0 0.0
        %557 = vmatpush2.msra.mxu0 0.0
        %558 = vmatprep.subr.mxu0 0.0
        %559 = vmatpush2.msra.mxu0 0.0
        %560 = vmatprep.subr.mxu0 0.0
        %561 = vmatpush2.msra.mxu0 0.0
        %562 = vmatprep.subr.mxu0 0.0
        %563 = vmatpush2.msra.mxu0 0.0
        %564 = vmatprep.subr.mxu0 0.0
        %565 = vmatpush2.msra.mxu0 0.0
        %566 = vmatprep.subr.mxu0 0.0
        %567 = vmatpush2.msra.mxu0 0.0
        %568 = vmatprep.subr.mxu0 0.0
        %569 = vmatpush2.msra.mxu0 0.0
        %570 = vmatprep.subr.mxu0 0.0
        %571 = vmatpush2.msra.mxu0 0.0
        %572 = vmatprep.subr.mxu0 0.0
        %573 = vmatpush2.msra.mxu0 0.0
        %574 = vmatprep.subr.mxu0 0.0
        %575 = vmatpush2.msra.mxu0 0.0
        %576 = vmatprep.subr.mxu0 0.0
        %577 = vmatpush2.msra.mxu0 0.0
        %578 = vmatprep.mubr.f32.mxu0 0.0
        %579 = vmatmul.mubr.f32.gmra.mxu0 %v512
        %v580 = vpop.f32.mrf.mxu0
        %v581 = vadd.f32 0.0, %v580
        %v582 = vpop.f32.mrf.mxu0
        %v583 = vadd.f32 0.0, %v582
        %584 = vdwg.mxu0
        %585 = vst [vmem:[%s174] sm:$0xff] %v581
        %586 = vst [vmem:[%s174 + $0x8] sm:$0xff] %v583
        %s587 = sand.u32 %s75, 1
        %s588 = scalar_lea.sflag [#allocation4], %s587
        %s589 = sand.u32 %s75, 1
        %s590 = smul.addr %s589, 16
        %s591 = scalar_lea.vmem [#allocation7], %s590
        // Predicated region
        $region37: #{tpu_custom_call.1} parent=27 // pred_check
          %p592 = pneg %p85
        $region38: #{tpu_custom_call.1} parent=27 // pred_check_branch
          %594 = sbr.rel (%p592) target = $region40
        $region39: #{tpu_custom_call.1} parent=27 // pred_region
          %s596 = ssub.s32 256, 256
          %597 = vsyncadd %s588, %s596
          %s598 = smul.addr %s20, 2
          %s599 = smul.addr %s598, 128
          %s600 = scalar_lea.hbm %s2, %s599
          %s602 = sshll.u32 %s591, 4
          %s603 = int_to_ptr.vmem [resolvable:$true] %s602
          %605 = dma.vmem_to_hbm [thread:$0]  %s603, 256, %s600, %s588
        $region40: #{tpu_custom_call.1} parent=27 // pred_fallthru
          _
      $region28: #{tpu_custom_call.1} parent=5 // pred_fallthru
        _
      %p606 = scmp.le.s32.totalorder 2, %s15
      // Predicated region
      $region41: #{tpu_custom_call.1} parent=5 // pred_check
        %p607 = pneg %p606
      $region42: #{tpu_custom_call.1} parent=5 // pred_check_branch
        %609 = sbr.rel (%p607) target = $region44
      $region43: #{tpu_custom_call.1} parent=5 // pred_region
        %s610 = ssub.s32 %s15, 2
        // Predicated region
        $region45: #{tpu_custom_call.1} parent=43 // pred_check
          %p611 = pneg %p91
        $region46: #{tpu_custom_call.1} parent=43 // pred_check_branch
          %613 = sbr.rel (%p611) target = $region48
        $region47: #{tpu_custom_call.1} parent=43 // pred_region
          %s614 = sand.u32 %s76, 1
          %s615 = scalar_lea.sflag [#allocation4], %s614
          %s616 = sand.u32 %s76, 1
          %s617 = smul.addr %s616, 16
          %s618 = scalar_lea.vmem [#allocation7], %s617
          %619 = dma.done %s615, 256
        $region48: #{tpu_custom_call.1} parent=43 // pred_fallthru
          _
      $region44: #{tpu_custom_call.1} parent=5 // pred_fallthru
        _
    $region6: #{tpu_custom_call.1} parent=1 // loop_footer
      %s19 = sadd.s32 1, %s15
    $region7: #{tpu_custom_call.1} parent=1 // loop_footer_branch
      %14 = sbr.rel target = $region3
    $region8: #{tpu_custom_call.1} parent=1 // loop_exit
      _
    %620 = vsyncpa [#allocation3], 1
    %s621 = scalar_lea.sflag [#allocation3], 1
    %622 = vsyncpa %s621, 1
    %623 = vsyncpa [#allocation6], 1
    %624 = vsyncpa [#allocation4], 1
    %s625 = scalar_lea.sflag [#allocation4], 1
    %626 = vsyncpa %s625, 1

</llo_original>
